<compile_context>
chip_gen: v5e
topology: v5e:2x2
jax: 0.10.0
libtpu: 0.0.40
codegen_flags: <defaults>
</compile_context>

<pallas_src>
import functools

import jax
import jax.numpy as jnp
from jax.experimental import pallas as pl
from jax.experimental.pallas import tpu as pltpu


def _vmem_limit_bytes():
    """Scoped-VMEM limit derived from the running chip (fallback: v7x-safe)."""
    try:
        phys = int(pltpu.get_tpu_info().vmem_capacity_bytes)
    except Exception:
        phys = 64 * 1024 * 1024
    # 3/4 of physical, capped at 64 MiB: 64 MiB on v5e/v6e (128 MiB VMEM),
    # 48 MiB on v7x (64 MiB per-TensorCore VMEM).
    return min(phys * 3 // 4, 64 * 1024 * 1024)


def _bf16_vpu_ok():
    """True on chips with a packed-bf16 VALU (v6e / v7x); False on v5e."""
    try:
        kind = jax.devices()[0].device_kind.lower()
    except Exception:
        return True
    return not any(t in kind for t in ("v5 lite", "v5lite", "v5e"))


def _lrp_pool_bwd_kernel(rk_ref, ak_ref, aj_ref, out_ref, *,
                         e, inv_n, c_on_lanes, compute_dtype):
    """One (batch, C-tile, K-tile) grid step.

    rk_ref : [1, Kt, Ct]                relevance at the (1,1) pool output
    ak_ref : [1, 1, Ct]                 pooled activations (spatial mean of aJ)
    aj_ref : [1, Ct, HW] or [1, HW, Ct] activations entering the pool
    out_ref: [1, Kt, Ct, HW] or [1, Kt, HW, Ct]
    """
    ak = ak_ref[0, :, :].astype(jnp.float32)                       # [1, Ct]
    stab = jnp.where(ak >= 0, jnp.float32(e), jnp.float32(-e))     # sign(0) -> +e
    z = ak + stab
    # EUP-seeded approximate reciprocal + one Newton step (fp32-accurate);
    # 1/(H*W) folded into the per-channel scale.
    r = pl.reciprocal(z, approx=True)
    r = r * (jnp.float32(2.0) - z * r)
    scale = r * jnp.float32(inv_n)                                 # [1, Ct]

    rk = rk_ref[0, :, :].astype(jnp.float32)                       # [Kt, Ct]
    s = (rk * scale).astype(compute_dtype)                         # [Kt, Ct]
    aj = aj_ref[0, :, :].astype(compute_dtype)                     # big operand

    if c_on_lanes:
        # aj: [HW, Ct]; s broadcasts over HW (cheap sublane stride-0 broadcast).
        out = s[:, None, :] * aj[None, :, :]                       # [Kt, HW, Ct]
    else:
        # aj: [Ct, HW]; s broadcasts over HW lanes.
        out = s[:, :, None] * aj[None, :, :]                       # [Kt, Ct, HW]
    out_ref[0, :, :, :] = out.astype(out_ref.dtype)


def lrp_adaptive_pool2d(rK, aJ, aK, aKConv=None, *, e=1e-2, rule="e",
                        _force_k_tile=None, _force_c_tile=None):
    """ISNet LRP relevance propagation through AdaptiveAvgPool2d((1,1)).

    rK: [B, K, C, 1, 1]  relevance at the pool output (K = classes / heatmaps)
    aJ: [B, C, H, W]     activations entering the pool
    aK: [B, C, 1, 1]     pooled activations (spatial mean of aJ)
    aKConv: unused here (kept for w2BNRuleInput signature compatibility).
    Returns rJ: [B, K, C, H, W] in the input storage dtype.
    """
    del aKConv  # TODO(synk): only needed by the BN-fused conv (w^2) path.

    if rule not in ("e", "z+e"):
        raise NotImplementedError(
            f"rule={rule!r} is not implemented; only 'e' and 'z+e' are supported.")

    B, K, C, oh, ow = rK.shape
    _, _, H, W = aJ.shape
    if (oh, ow) != (1, 1):
        raise NotImplementedError("only (1,1) adaptive output (global average pool).")
    HW = H * W

    if rule == "z+e":
        # z+ rule for avg pooling: only positive inputs contribute; recompute the
        # pooled activation with fp32 accumulation (bf16 means can drift).
        aJ = jnp.maximum(aJ, 0)
        aK = jnp.mean(aJ.astype(jnp.float32), axis=(2, 3), keepdims=True)

    # Preserve storage dtype end to end; heavy math dtype is chosen below.
    out_dtype = jnp.result_type(aJ.dtype, rK.dtype)
    out_bytes = jnp.dtype(out_dtype).itemsize
    aj_bytes = jnp.dtype(aJ.dtype).itemsize
    rk_bytes = jnp.dtype(rK.dtype).itemsize
    ak_bytes = jnp.dtype(aK.dtype).itemsize

    # bf16 broadcast-multiply on v6e/v7x when output is bf16 (halves VALU work
    # and store traffic for the only large tensor); fp32 elsewhere.
    compute_dtype = (jnp.bfloat16
                     if (out_dtype == jnp.bfloat16 and _bf16_vpu_ok())
                     else jnp.float32)

    # Lane-dense output layout: when HW is not a lane multiple (7x7=49, 14x14=196)
    # but C is, put C on the lane axis so the dominant stores are unmasked.
    c_on_lanes = (HW % 128 != 0) and (C % 128 == 0)

    vmem_limit = _vmem_limit_bytes()
    step_budget = int(vmem_limit * 0.7)  # leave headroom for Mosaic internals

    def footprint(kt, ct):
        # Full double-buffered per-step VMEM footprint of all operand blocks.
        return 2 * (kt * ct * HW * out_bytes + ct * HW * aj_bytes
                    + kt * ct * rk_bytes + ct * ak_bytes)

    # ---- C tile: full C, or a multiple of 128 small enough that a minimal
    #      K tile's double-buffered blocks fit the step budget ----
    kt_min = K if K <= 8 else 8
    c_tile = C
    if C > 128:
        while c_tile > 128 and footprint(kt_min, c_tile) > step_budget:
            c_tile = max(128, ((c_tile // 2) // 128) * 128)
    # TODO(synk): an HW tile would be needed if C <= 128 and C*HW alone exceeds
    # the budget; not expected for a global-average-pool input.

    # ---- K tile: the largest (multiple of 8, or == K) that fits the budget ----
    if K <= 8 or footprint(K, c_tile) <= step_budget:
        k_tile = K
    else:
        per_k = 2 * c_tile * (HW * out_bytes + rk_bytes)
        fixed = 2 * c_tile * (HW * aj_bytes + ak_bytes)
        kt_max = max(1, (step_budget - fixed) // max(1, per_k))
        k_tile = K if kt_max >= K else min(K, max(8, (kt_max // 8) * 8))

    num_k = pl.cdiv(K, k_tile)
    num_c = pl.cdiv(C, c_tile)

    # ---- guarantee >= 2 parallel grid steps so both v7x TensorCores get work ----
    if B * num_k * num_c < 2:
        if K > 8:
            k_tile = max(8, (((K + 1) // 2 + 7) // 8) * 8)
        elif C > 128:
            c_tile = max(128, (((C + 1) // 2 + 127) // 128) * 128)
        num_k = pl.cdiv(K, k_tile)
        num_c = pl.cdiv(C, c_tile)

    # ---- test-only overrides (exercise partial cdiv tiles on small shapes) ----
    if _force_k_tile is not None:
        k_tile = int(_force_k_tile)
        assert k_tile == K or (k_tile < K and k_tile % 8 == 0), "bad forced k_tile"
        num_k = pl.cdiv(K, k_tile)
    if _force_c_tile is not None:
        c_tile = int(_force_c_tile)
        assert c_tile == C or (c_tile < C and c_tile % 128 == 0), "bad forced c_tile"
        num_c = pl.cdiv(C, c_tile)

    rk_r = rK.reshape(B, K, C)
    ak_r = aK.reshape(B, 1, C)
    if c_on_lanes:
        # aJ transposed once (1/K of the output size) so stores are lane-dense.
        aj_r = aJ.reshape(B, C, HW).transpose(0, 2, 1)                     # [B, HW, C]
        aj_spec = pl.BlockSpec((1, HW, c_tile), lambda b, c, k: (b, 0, c))
        out_spec = pl.BlockSpec((1, k_tile, HW, c_tile), lambda b, c, k: (b, k, 0, c))
        out_shape = jax.ShapeDtypeStruct((B, K, HW, C), out_dtype)
    else:
        aj_r = aJ.reshape(B, C, HW)                                        # [B, C, HW]
        aj_spec = pl.BlockSpec((1, c_tile, HW), lambda b, c, k: (b, c, 0))
        out_spec = pl.BlockSpec((1, k_tile, c_tile, HW), lambda b, c, k: (b, k, c, 0))
        out_shape = jax.ShapeDtypeStruct((B, K, C, HW), out_dtype)

    kernel = functools.partial(
        _lrp_pool_bwd_kernel, e=float(e), inv_n=1.0 / HW,
        c_on_lanes=c_on_lanes, compute_dtype=compute_dtype)

    num_steps = B * num_k * num_c
    cost = pl.CostEstimate(
        flops=int(2 * B * K * C * HW + 8 * num_steps * c_tile),
        transcendentals=int(num_steps * c_tile),
        bytes_accessed=int(
            B * K * C * HW * out_bytes          # rJ writes
            + B * num_k * C * HW * aj_bytes     # aJ reads (<= once per K tile)
            + B * K * C * rk_bytes              # rK reads
            + B * num_steps * c_tile * ak_bytes),
    )

    out = pl.pallas_call(
        kernel,
        out_shape=out_shape,
        grid_spec=pltpu.PrefetchScalarGridSpec(
            num_scalar_prefetch=0,
            # K innermost: the aJ block (depends on b, c only) stays resident
            # across the inner K steps.
            grid=(B, num_c, num_k),
            in_specs=[
                pl.BlockSpec((1, k_tile, c_tile), lambda b, c, k: (b, k, c)),  # rK
                pl.BlockSpec((1, 1, c_tile), lambda b, c, k: (b, 0, c)),       # aK
                aj_spec,                                                       # aJ
            ],
            out_specs=out_spec,
        ),
        compiler_params=pltpu.CompilerParams(
            dimension_semantics=("parallel", "parallel", "parallel"),
            vmem_limit_bytes=int(vmem_limit),
        ),
        cost_estimate=cost,
    )(rk_r, ak_r, aj_r)

    if c_on_lanes:
        # TODO(synk): this transpose round-trips rJ through HBM once more; if the
        # downstream LRP layer can consume [B, K, HW, C] (or be fused), drop it.
        out = out.transpose(0, 1, 3, 2)                                    # [B, K, C, HW]
    return out.reshape(B, K, C, H, W)


def w2_bn_rule_input(rK, aJ, aKConv, aK, *, e=1e-2, rule="e"):
    # TODO(synk): the true w^2 + BN fused-conv propagation needs the conv layer's
    # weights / BN statistics (not present in the module spec); this keeps the
    # pooling-relevance (LRP-eps / z+e) semantics only.
    return lrp_adaptive_pool2d(rK, aJ, aK, aKConv, e=e, rule=rule)


def _reference_e(rK, aJ, aK, e):
    # Pure-JAX fp32 reference of the LRP-eps pooling backward.
    aK32 = aK.astype(jnp.float32)
    z = aK32 + jnp.where(aK32 >= 0, jnp.float32(e), jnp.float32(-e))   # [B, C, 1, 1]
    s = rK.astype(jnp.float32) / z[:, None]                            # [B, K, C, 1, 1]
    H, W = aJ.shape[-2:]
    return aJ.astype(jnp.float32)[:, None] * s / (H * W)               # [B, K, C, H, W]


if __name__ == "__main__":
    key = jax.random.PRNGKey(0)
    kb, kr, kb2, kr2, kb3, kr3 = jax.random.split(key, 6)

    e = 1e-2

    # --- case 1: lane-aligned HW (16x16), fp32, epsilon rule ---
    B, K, C, H, W = 2, 3, 4, 16, 16
    aJ = jax.random.normal(kb, (B, C, H, W), dtype=jnp.float32)
    aK = jnp.mean(aJ, axis=(2, 3), keepdims=True)
    rK = jax.random.normal(kr, (B, K, C, 1, 1), dtype=jnp.float32)

    rJ = jax.block_until_ready(lrp_adaptive_pool2d(rK, aJ, aK, e=e, rule="e"))
    rJ_ref = _reference_e(rK, aJ, aK, e)
    assert rJ.shape == (B, K, C, H, W) and rJ.dtype == jnp.float32
    assert jnp.allclose(rJ, rJ_ref, rtol=2e-4, atol=1e-6), "eps-rule mismatch"

    # --- case 2: z+e rule (wrapper relu's aJ and re-pools in fp32) ---
    rJ_zp = jax.block_until_ready(lrp_adaptive_pool2d(rK, aJ, aK, e=e, rule="z+e"))
    aJp = jnp.maximum(aJ, 0.0)
    aKp = jnp.mean(aJp, axis=(2, 3), keepdims=True)
    rJ_zp_ref = _reference_e(rK, aJp, aKp, e)
    assert jnp.allclose(rJ_zp, rJ_zp_ref, rtol=2e-4, atol=1e-6), "z+e rule mismatch"

    # --- case 3: bf16 I/O path (bf16 VPU math on v6e/v7x, bf16 stores) ---
    rJ_bf = jax.block_until_ready(
        lrp_adaptive_pool2d(rK.astype(jnp.bfloat16), aJ.astype(jnp.bfloat16),
                            aK.astype(jnp.bfloat16), e=e, rule="e"))
    assert rJ_bf.dtype == jnp.bfloat16
    rJ_bf_ref = _reference_e(rK.astype(jnp.bfloat16), aJ.astype(jnp.bfloat16),
                             aK.astype(jnp.bfloat16), e)
    assert jnp.allclose(rJ_bf.astype(jnp.float32), rJ_bf_ref,
                        rtol=7e-2, atol=5e-4), "bf16 path mismatch"

    # --- case 4: production-like 7x7 spatial with C % 128 == 0 -> C-on-lanes layout ---
    B2, K2, C2, H2, W2 = 2, 3, 128, 7, 7
    aJ2 = jax.random.normal(kb2, (B2, C2, H2, W2), dtype=jnp.float32)
    aK2 = jnp.mean(aJ2, axis=(2, 3), keepdims=True)
    rK2 = jax.random.normal(kr2, (B2, K2, C2, 1, 1), dtype=jnp.float32)
    rJ2 = jax.block_until_ready(lrp_adaptive_pool2d(rK2, aJ2, aK2, e=e, rule="e"))
    rJ2_ref = _reference_e(rK2, aJ2, aK2, e)
    assert rJ2.shape == (B2, K2, C2, H2, W2)
    assert jnp.allclose(rJ2, rJ2_ref, rtol=2e-4, atol=1e-6), "C-on-lanes layout mismatch"

    # --- case 5: forced cdiv tiling with partial K and C tiles (prime-ish sizes) ---
    B3, K3, C3, H3, W3 = 1, 13, 200, 7, 7
    aJ3 = jax.random.normal(kb3, (B3, C3, H3, W3), dtype=jnp.float32)
    aK3 = jnp.mean(aJ3, axis=(2, 3), keepdims=True)
    rK3 = jax.random.normal(kr3, (B3, K3, C3, 1, 1), dtype=jnp.float32)
    rJ3 = jax.block_until_ready(
        lrp_adaptive_pool2d(rK3, aJ3, aK3, e=e, rule="e",
                            _force_k_tile=8, _force_c_tile=128))
    rJ3_ref = _reference_e(rK3, aJ3, aK3, e)
    assert rJ3.shape == (B3, K3, C3, H3, W3)
    assert jnp.allclose(rJ3, rJ3_ref, rtol=2e-4, atol=1e-6), "partial-tile mismatch"

    # --- unsupported rule must raise instead of silently falling back ---
    try:
        lrp_adaptive_pool2d(rK, aJ, aK, e=e, rule="AB")
        raise AssertionError("rule='AB' should raise NotImplementedError")
    except NotImplementedError:
        pass

    print("KERNEL_OK")
</pallas_src>

<mosaic_0001>
module attributes {stable_mosaic.version = 11 : i64} {
  func.func @_lrp_pool_bwd_kernel(%arg0: i32, %arg1: i32, %arg2: i32, %arg3: memref<1x3x4xf32, #tpu.memory_space<vmem>>, %arg4: memref<1x1x4xf32, #tpu.memory_space<vmem>>, %arg5: memref<1x4x256xf32, #tpu.memory_space<vmem>>, %arg6: memref<1x3x4x256xf32, #tpu.memory_space<vmem>>) attributes {dimension_semantics = [#tpu.dimension_semantics<parallel>, #tpu.dimension_semantics<parallel>, #tpu.dimension_semantics<parallel>], iteration_bounds = array<i64: 2, 1, 1>, scalar_prefetch = 0 : i64, scratch_operands = 0 : i64, tpu.core_type = #tpu.core_type<tc>, window_params = [{transform_indices = @transform_0, window_bounds = array<i64: 1, 3, 4>}, {transform_indices = @transform_1, window_bounds = array<i64: 1, 1, 4>}, {transform_indices = @transform_2, window_bounds = array<i64: 1, 4, 256>}, {transform_indices = @transform_3, window_bounds = array<i64: 1, 3, 4, 256>}]} {
    %c0 = arith.constant 0 : index
    %c0_0 = arith.constant 0 : index
    %c0_1 = arith.constant 0 : index
    %0 = vector.load %arg4[%c0, %c0_0, %c0_1] : memref<1x1x4xf32, #tpu.memory_space<vmem>>, vector<1x1x4xf32>
    %1 = vector.shape_cast %0 : vector<1x1x4xf32> to vector<1x4xf32>
    %cst = arith.constant 0.000000e+00 : f32
    %2 = vector.broadcast %cst : f32 to vector<1x4xf32>
    %3 = arith.cmpf oge, %1, %2 : vector<1x4xf32>
    %cst_2 = arith.constant 0.00999999977 : f32
    %cst_3 = arith.constant -0.00999999977 : f32
    %4 = vector.broadcast %cst_2 : f32 to vector<1x4xf32>
    %5 = vector.broadcast %cst_3 : f32 to vector<1x4xf32>
    %6 = arith.select %3, %4, %5 : vector<1x4xi1>, vector<1x4xf32>
    %7 = arith.addf %1, %6 : vector<1x4xf32>
    %8 = tpu.reciprocal %7 {approx = true} : vector<1x4xf32> -> vector<1x4xf32>
    %9 = arith.mulf %7, %8 : vector<1x4xf32>
    %cst_4 = arith.constant 2.000000e+00 : f32
    %10 = vector.broadcast %cst_4 : f32 to vector<1x4xf32>
    %11 = arith.subf %10, %9 : vector<1x4xf32>
    %12 = arith.mulf %8, %11 : vector<1x4xf32>
    %cst_5 = arith.constant 3.906250e-03 : f32
    %13 = vector.broadcast %cst_5 : f32 to vector<1x4xf32>
    %14 = arith.mulf %12, %13 : vector<1x4xf32>
    %c0_6 = arith.constant 0 : index
    %c0_7 = arith.constant 0 : index
    %c0_8 = arith.constant 0 : index
    %15 = vector.load %arg3[%c0_6, %c0_7, %c0_8] : memref<1x3x4xf32, #tpu.memory_space<vmem>>, vector<1x3x4xf32>
    %16 = vector.shape_cast %15 : vector<1x3x4xf32> to vector<3x4xf32>
    %17 = vector.broadcast %14 : vector<1x4xf32> to vector<3x4xf32>
    %18 = arith.mulf %16, %17 : vector<3x4xf32>
    %c0_9 = arith.constant 0 : index
    %c0_10 = arith.constant 0 : index
    %c0_11 = arith.constant 0 : index
    %19 = vector.load %arg5[%c0_9, %c0_10, %c0_11] : memref<1x4x256xf32, #tpu.memory_space<vmem>>, vector<1x4x256xf32>
    %20 = vector.shape_cast %19 : vector<1x4x256xf32> to vector<4x256xf32>
    %21 = vector.shape_cast %18 : vector<3x4xf32> to vector<3x4x1xf32>
    %22 = vector.shape_cast %20 : vector<4x256xf32> to vector<1x4x256xf32>
    %23 = vector.broadcast %21 : vector<3x4x1xf32> to vector<3x4x256xf32>
    %24 = vector.broadcast %22 : vector<1x4x256xf32> to vector<3x4x256xf32>
    %25 = arith.mulf %23, %24 : vector<3x4x256xf32>
    %c0_12 = arith.constant 0 : index
    %c0_13 = arith.constant 0 : index
    %c0_14 = arith.constant 0 : index
    %c0_15 = arith.constant 0 : index
    %26 = vector.load %arg6[%c0_12, %c0_13, %c0_14, %c0_15] : memref<1x3x4x256xf32, #tpu.memory_space<vmem>>, vector<1x3x4x256xf32>
    %27 = vector.shape_cast %26 : vector<1x3x4x256xf32> to vector<3x4x256xf32>
    %28 = vector.shape_cast %25 : vector<3x4x256xf32> to vector<1x3x4x256xf32>
    tpu.vector_store %arg6[%c0_12, %c0_13, %c0_14, %c0_15], %28 {strides = array<i32>} : memref<1x3x4x256xf32, #tpu.memory_space<vmem>>, vector<1x3x4x256xf32>,
    return
  }
  func.func @transform_0(%arg0: i32, %arg1: i32, %arg2: i32) -> (i32, i32, i32) {
    %c0_i32 = arith.constant 0 : i32
    return %arg0, %arg2, %arg1 : i32, i32, i32
  }
  func.func @transform_1(%arg0: i32, %arg1: i32, %arg2: i32) -> (i32, i32, i32) {
    %c0_i32 = arith.constant 0 : i32
    %c0_i32_0 = arith.constant 0 : i32
    return %arg0, %c0_i32, %arg1 : i32, i32, i32
  }
  func.func @transform_2(%arg0: i32, %arg1: i32, %arg2: i32) -> (i32, i32, i32) {
    %c0_i32 = arith.constant 0 : i32
    %c0_i32_0 = arith.constant 0 : i32
    return %arg0, %arg1, %c0_i32 : i32, i32, i32
  }
  func.func @transform_3(%arg0: i32, %arg1: i32, %arg2: i32) -> (i32, i32, i32, i32) {
    %c0_i32 = arith.constant 0 : i32
    %c0_i32_0 = arith.constant 0 : i32
    return %arg0, %arg2, %arg1, %c0_i32 : i32, i32, i32, i32
  }
}

</mosaic_0001>

<llo_original>
// kernel: tpu_custom_call.1
$region0: #{tpu_custom_call.1}
  #allocation0 [shape = 'u32[]', space=smem, size = 0x4, offset = 0x4, fixed_abs, tag = 'smem constant byte address 0x4 - core index']
  #allocation1 [shape = 'u32[72,128]{1,0:T(1,128)}', space=vmem, size = 0x9000, scoped, tag = 'internal scratch']
  %s0 = inlined_call_operand.vmem [shape: f32[2,3,4], index: 0, kind: input, shape index: {}]
  %s1 = inlined_call_operand.vmem [shape: f32[2,1,4], index: 1, kind: input, shape index: {}]
  %s2 = inlined_call_operand.hbm [shape: f32[2,4,256], index: 2, kind: input, shape index: {}]
  %s3 = inlined_call_operand.hbm [shape: f32[2,3,4,256], index: 3, kind: output, shape index: {}]
  %s4 = sld [smem:[#allocation0]]
  $region49: #{tpu_custom_call.1} parent=0
    _
  %s6 = ssub.s32 1, %s4
  %s7 = scalar_select 0, %s6, %s4
  $region1: #{tpu_custom_call.1} parent=0
    #allocation2 [shape = 'u8[8192]{0}', space=vmem, size = 0x2000, scoped, tag = 'input window, operand 2']
    #allocation3 [shape = 's32[2]{0}', space=sflag, size = 0x8, scoped, tag = 'scoped memory for tpu_custom_call.1']
    #allocation4 [shape = 's32[2]{0}', space=sflag, size = 0x8, scoped, tag = 'scoped memory for tpu_custom_call.1']
    #allocation5 [shape = 'u8[24576]{0}', space=vmem, size = 0x6000, scoped, tag = 'output window, operand 0']
    %8 = vsyncpa [#allocation3], 0
    %s9 = scalar_lea.sflag [#allocation3], 1
    %10 = vsyncpa %s9, 0
    %11 = vsyncpa [#allocation4], 0
    %s12 = scalar_lea.sflag [#allocation4], 1
    %13 = vsyncpa %s12, 0
    loop: start=0, step=1, limit=4
    $region2: #{tpu_custom_call.1} parent=1 // loop_pre_header
      _
    $region3: #{tpu_custom_call.1} parent=1 // loop_header
      %s15 = sphi 0, %s19
      %p16 = scmp.ge.s32.totalorder %s15, 4
      %s22 = sphi 0, %s41
      %s23 = sphi 0, %s37
      %s24 = sphi 0, %s33
      %s25 = sphi 0, %s22
      %s26 = sphi 0, %s23
      %s27 = sphi 0, %s24
      %s28 = sphi 0, %s25
      %s29 = sphi 0, %s26
      %s30 = sphi 0, %s27
      %s48 = sphi 0, %s50
      %s51 = sphi 0, %s48
      %s52 = sphi 0, %s51
      %s68 = sphi 0, %s52
      %s76 = sphi 0, %s78
      %s79 = sphi 0, %s76
      %s80 = sphi 0, %s79
      %s96 = sphi 0, %s80
      %s104 = sphi 0, %s106
      %s107 = sphi 0, %s104
      %s108 = sphi 0, %s107
      %s124 = sphi 0, %s108
      %s134 = sphi 0, %s136
      %s137 = sphi 0, %s134
      %s138 = sphi 0, %s137
      %s154 = sphi 0, %s138
    $region4: #{tpu_custom_call.1} parent=1 // loop_header_branch
      %18 = sbr.rel (%p16) target = $region8
    $region5: #{tpu_custom_call.1} parent=1 // loop_body
      %s20 = ssub.s32 %s15, 1
      %s21 = ssub.s32 %s15, 2
      %s31 = sadd.s32 1, %s24
      %p32 = scmp.ge.s32.totalorder %s31, 1
      %s33 = scalar_select %p32, 0, %s31
      %s34 = sadd.s32 1, %s23
      %s35 = scalar_select %p32, %s34, %s23
      %p36 = scmp.ge.s32.totalorder %s35, 1
      %s37 = scalar_select %p36, 0, %s35
      %s38 = sadd.s32 1, %s22
      %s39 = scalar_select %p36, %s38, %s22
      %p40 = scmp.ge.s32.totalorder %s39, 2
      %s41 = scalar_select %p40, 0, %s39
      %s42 = ssub.s32 %s22, %s41
      %s43 = ssub.s32 %s24, %s33
      %s44 = sor.u32 %s42, %s43
      %s45 = ssub.s32 %s23, %s37
      %s46 = sor.u32 %s44, %s45
      %p47 = scmp.eq.s32.totalorder %s46, 0
      %s49 = sadd.s32 %s48, 1
      %s50 = scalar_select %p47, %s48, %s49
      %p53 = pneg %p47
      %p54 = scmp.eq.s32.totalorder %s15, 1
      %p55 = por %p53, %p54
      %p56 = scmp.ne.s32.totalorder %s48, %s51
      %p57 = scmp.eq.s32.totalorder %s15, 0
      %p58 = por %p56, %p57
      %p59 = scmp.ne.s32.totalorder %s48, %s51
      %p60 = scmp.eq.s32.totalorder %s20, 1
      %p61 = por %p59, %p60
      %p62 = scmp.ne.s32.totalorder %s51, %s52
      %p63 = scmp.eq.s32.totalorder %s20, 0
      %p64 = por %p62, %p63
      %p65 = scmp.ne.s32.totalorder %s51, %s52
      %p66 = scmp.eq.s32.totalorder %s21, 1
      %p67 = por %p65, %p66
      %p69 = scmp.ne.s32.totalorder %s52, %s68
      %p70 = scmp.eq.s32.totalorder %s21, 0
      %p71 = por %p69, %p70
      %s72 = ssub.s32 %s22, %s41
      %s73 = ssub.s32 %s23, %s37
      %s74 = sor.u32 %s72, %s73
      %p75 = scmp.eq.s32.totalorder %s74, 0
      %s77 = sadd.s32 %s76, 1
      %s78 = scalar_select %p75, %s76, %s77
      %p81 = pneg %p75
      %p82 = scmp.eq.s32.totalorder %s15, 1
      %p83 = por %p81, %p82
      %p84 = scmp.ne.s32.totalorder %s76, %s79
      %p85 = scmp.eq.s32.totalorder %s15, 0
      %p86 = por %p84, %p85
      %p87 = scmp.ne.s32.totalorder %s76, %s79
      %p88 = scmp.eq.s32.totalorder %s20, 1
      %p89 = por %p87, %p88
      %p90 = scmp.ne.s32.totalorder %s79, %s80
      %p91 = scmp.eq.s32.totalorder %s20, 0
      %p92 = por %p90, %p91
      %p93 = scmp.ne.s32.totalorder %s79, %s80
      %p94 = scmp.eq.s32.totalorder %s21, 1
      %p95 = por %p93, %p94
      %p97 = scmp.ne.s32.totalorder %s80, %s96
      %p98 = scmp.eq.s32.totalorder %s21, 0
      %p99 = por %p97, %p98
      %s100 = ssub.s32 %s22, %s41
      %s101 = ssub.s32 %s23, %s37
      %s102 = sor.u32 %s100, %s101
      %p103 = scmp.eq.s32.totalorder %s102, 0
      %s105 = sadd.s32 %s104, 1
      %s106 = scalar_select %p103, %s104, %s105
      %p109 = pneg %p103
      %p110 = scmp.eq.s32.totalorder %s15, 1
      %p111 = por %p109, %p110
      %p112 = scmp.ne.s32.totalorder %s104, %s107
      %p113 = scmp.eq.s32.totalorder %s15, 0
      %p114 = por %p112, %p113
      %p115 = scmp.ne.s32.totalorder %s104, %s107
      %p116 = scmp.eq.s32.totalorder %s20, 1
      %p117 = por %p115, %p116
      %p118 = scmp.ne.s32.totalorder %s107, %s108
      %p119 = scmp.eq.s32.totalorder %s20, 0
      %p120 = por %p118, %p119
      %p121 = scmp.ne.s32.totalorder %s107, %s108
      %p122 = scmp.eq.s32.totalorder %s21, 1
      %p123 = por %p121, %p122
      %p125 = scmp.ne.s32.totalorder %s108, %s124
      %p126 = scmp.eq.s32.totalorder %s21, 0
      %p127 = por %p125, %p126
      %s128 = ssub.s32 %s22, %s41
      %s129 = ssub.s32 %s24, %s33
      %s130 = sor.u32 %s128, %s129
      %s131 = ssub.s32 %s23, %s37
      %s132 = sor.u32 %s130, %s131
      %p133 = scmp.eq.s32.totalorder %s132, 0
      %s135 = sadd.s32 %s134, 1
      %s136 = scalar_select %p133, %s134, %s135
      %p139 = pneg %p133
      %p140 = scmp.eq.s32.totalorder %s15, 1
      %p141 = por %p139, %p140
      %p142 = scmp.ne.s32.totalorder %s134, %s137
      %p143 = scmp.eq.s32.totalorder %s15, 0
      %p144 = por %p142, %p143
      %p145 = scmp.ne.s32.totalorder %s134, %s137
      %p146 = scmp.eq.s32.totalorder %s20, 1
      %p147 = por %p145, %p146
      %p148 = scmp.ne.s32.totalorder %s137, %s138
      %p149 = scmp.eq.s32.totalorder %s20, 0
      %p150 = por %p148, %p149
      %p151 = scmp.ne.s32.totalorder %s137, %s138
      %p152 = scmp.eq.s32.totalorder %s21, 1
      %p153 = por %p151, %p152
      %p155 = scmp.ne.s32.totalorder %s138, %s154
      %p156 = scmp.eq.s32.totalorder %s21, 0
      %p157 = por %p155, %p156
      %p158 = scmp.le.s32.totalorder 1, %s15
      %p159 = scmp.lt.s32.totalorder %s15, 3
      %p160 = pnand %p158, %p159
      %p161 = pneg %p160
      // Predicated region
      $region9: #{tpu_custom_call.1} parent=5 // pred_check
        _
      $region10: #{tpu_custom_call.1} parent=5 // pred_check_branch
        %163 = sbr.rel (%p160) target = $region12
      $region11: #{tpu_custom_call.1} parent=5 // pred_region
        %s164 = ssub.s32 %s15, 1
      $region12: #{tpu_custom_call.1} parent=5 // pred_fallthru
        _
      %p165 = scmp.lt.s32.totalorder %s15, 2
      // Predicated region
      $region13: #{tpu_custom_call.1} parent=5 // pred_check
        %p166 = pneg %p165
      $region14: #{tpu_custom_call.1} parent=5 // pred_check_branch
        %168 = sbr.rel (%p166) target = $region16
      $region15: #{tpu_custom_call.1} parent=5 // pred_region
        // Predicated region
        $region17: #{tpu_custom_call.1} parent=15 // pred_check
          %p169 = pneg %p58
        $region18: #{tpu_custom_call.1} parent=15 // pred_check_branch
          %171 = sbr.rel (%p169) target = $region20
        $region19: #{tpu_custom_call.1} parent=15 // pred_region
          %p172 = scmp.lt.s32.totalorder %s22, 1
          %s173 = scalar_select %p172, %s22, 1
          %p174 = scmp.lt.s32.totalorder %s24, 0
          %s175 = scalar_select %p174, %s24, 0
          %p176 = scmp.lt.s32.totalorder %s23, 0
          %s177 = scalar_select %p176, %s23, 0
          %s178 = sadd.s32 %s177, %s175
          %s179 = sadd.s32 %s178, %s173
          %s180 = smul.addr %s179, 4
          %s181 = scalar_lea.vmem %s0, %s180
        $region20: #{tpu_custom_call.1} parent=15 // pred_fallthru
          _
        // Predicated region
        $region21: #{tpu_custom_call.1} parent=15 // pred_check
          %p182 = pneg %p86
        $region22: #{tpu_custom_call.1} parent=15 // pred_check_branch
          %184 = sbr.rel (%p182) target = $region24
        $region23: #{tpu_custom_call.1} parent=15 // pred_region
          %p185 = scmp.lt.s32.totalorder %s22, 1
          %s186 = scalar_select %p185, %s22, 1
          %p187 = scmp.lt.s32.totalorder %s23, 0
          %s188 = scalar_select %p187, %s23, 0
          %s189 = sadd.s32 %s188, %s186
          %s190 = scalar_lea.vmem %s1, %s189
        $region24: #{tpu_custom_call.1} parent=15 // pred_fallthru
          _
        // Predicated region
        $region25: #{tpu_custom_call.1} parent=15 // pred_check
          %p191 = pneg %p114
        $region26: #{tpu_custom_call.1} parent=15 // pred_check_branch
          %193 = sbr.rel (%p191) target = $region28
        $region27: #{tpu_custom_call.1} parent=15 // pred_region
          %s194 = sand.u32 %s104, 1
          %s195 = scalar_lea.sflag [#allocation3], %s194
          %s196 = sand.u32 %s104, 1
          %s197 = smul.addr %s196, 8
          %s198 = scalar_lea.vmem [#allocation2], %s197
          %200 = vsyncadd %s195, 0
          %s201 = smul.addr %s23, 2
          %s202 = smul.addr %s22, 2
          %s203 = sadd.s32 %s201, %s202
          %s204 = smul.addr %s203, 4
          %s205 = scalar_lea.hbm %s2, %s204
          %s207 = sshll.u32 %s205, 4
          %s208 = int_to_ptr.hbm [resolvable:$true] %s207
          %s209 = sshll.u32 %s198, 4
          %s210 = int_to_ptr.vmem [resolvable:$true] %s209
          %212 = dma.hbm_to_vmem [thread:$0]  %s208, 128, %s210, %s195
        $region28: #{tpu_custom_call.1} parent=15 // pred_fallthru
          _
      $region16: #{tpu_custom_call.1} parent=5 // pred_fallthru
        _
      %p213 = scmp.le.s32.totalorder 1, %s15
      %p214 = scmp.lt.s32.totalorder %s15, 3
      %p215 = pnand %p213, %p214
      %p216 = pneg %p215
      // Predicated region
      $region29: #{tpu_custom_call.1} parent=5 // pred_check
        _
      $region30: #{tpu_custom_call.1} parent=5 // pred_check_branch
        %218 = sbr.rel (%p215) target = $region32
      $region31: #{tpu_custom_call.1} parent=5 // pred_region
        %s219 = ssub.s32 %s15, 1
        %s220 = sand.u32 %s107, 1
        %s221 = scalar_lea.sflag [#allocation3], %s220
        %s222 = sand.u32 %s107, 1
        %s223 = smul.addr %s222, 8
        %s224 = scalar_lea.vmem [#allocation2], %s223
        // Predicated region
        $region33: #{tpu_custom_call.1} parent=31 // pred_check
          %p225 = pneg %p120
        $region34: #{tpu_custom_call.1} parent=31 // pred_check_branch
          %227 = sbr.rel (%p225) target = $region36
        $region35: #{tpu_custom_call.1} parent=31 // pred_region
          %229 = dma.done %s221, 128
        $region36: #{tpu_custom_call.1} parent=31 // pred_fallthru
          _
        %p230 = scmp.lt.s32.totalorder %s25, 1
        %s231 = scalar_select %p230, %s25, 1
        %p232 = scmp.lt.s32.totalorder %s27, 0
        %s233 = scalar_select %p232, %s27, 0
        %p234 = scmp.lt.s32.totalorder %s26, 0
        %s235 = scalar_select %p234, %s26, 0
        %s236 = sadd.s32 %s235, %s233
        %s237 = sadd.s32 %s236, %s231
        %s238 = smul.addr %s237, 4
        %s239 = scalar_lea.vmem %s0, %s238
        %p240 = pneg %p64
        %p241 = pneg %p61
        %p242 = scmp.lt.s32.totalorder %s25, 1
        %s243 = scalar_select %p242, %s25, 1
        %p244 = scmp.lt.s32.totalorder %s26, 0
        %s245 = scalar_select %p244, %s26, 0
        %s246 = sadd.s32 %s245, %s243
        %s247 = scalar_lea.vmem %s1, %s246
        %p248 = pneg %p92
        %p249 = pneg %p89
        %s250 = sand.u32 %s107, 1
        %s251 = scalar_lea.sflag [#allocation3], %s250
        %s252 = sand.u32 %s107, 1
        %s253 = smul.addr %s252, 8
        %s254 = scalar_lea.vmem [#allocation2], %s253
        %p255 = pneg %p120
        %p256 = pneg %p117
        %p257 = pneg %p150
        %p258 = pneg %p147
        %s259 = sand.u32 %s137, 1
        %s260 = scalar_lea.sflag [#allocation4], %s259
        %s261 = sand.u32 %s137, 1
        %s262 = smul.addr %s261, 24
        %s263 = scalar_lea.vmem [#allocation5], %s262
        %p264 = scmp.lt.s32.totalorder %s25, 1
        %s265 = scalar_select %p264, %s25, 1
        %p266 = scmp.lt.s32.totalorder %s27, 0
        %s267 = scalar_select %p266, %s27, 0
        %p268 = scmp.lt.s32.totalorder %s26, 0
        %s269 = scalar_select %p268, %s26, 0
        %s270 = sadd.s32 %s269, %s267
        %s271 = sadd.s32 %s270, %s265
        %s272 = smul.addr %s271, 4
        %s273 = scalar_lea.vmem %s0, %s272
        %p274 = scmp.lt.s32.totalorder %s25, 1
        %s275 = scalar_select %p274, %s25, 1
        %p276 = scmp.lt.s32.totalorder %s26, 0
        %s277 = scalar_select %p276, %s26, 0
        %s278 = sadd.s32 %s277, %s275
        %s279 = scalar_lea.vmem %s1, %s278
        %s280 = smul.u32 3, %s27
        %v281 = vld [vmem:[%s279] sm:$0x1]
        %vm282 = vcmp.ge.f32.partialorder %v281, 0.0
        %v283 = vsel %vm282, 0.01, -0.01
        %v284 = vadd.f32 %v281, %v283
        %v285 = vrcp.pop %v284
        %v286 = vmul.f32 %v284, %v285
        %v287 = vsub.f32 2.0, %v286
        %v288 = vmul.f32 %v285, %v287
        %v289 = vmul.f32 %v288, 0.00390625
        %v290 = vld [vmem:[%s273] sm:$0x7]
        %v292 = vperm.slane %v289, 0
        %v294 = vmul.f32 %v290, %v292
        %v295 = vld [vmem:[%s224] sm:$0xff]
        %v296 = vperm.slane %v294, 0
        %v297 = vlaneseq
        %v298 = vshrl.u32 %v297, 7
        %300 = vset.pattern.permute.xlu0 %v298
        %301 = vperm.xlu0 %300, %v296
        %v302 = vpop.permute.xlu0 %301
        %v303 = vperm.slane %v294, 1
        %v304 = vlaneseq
        %v305 = vshrl.u32 %v304, 7
        %307 = vset.pattern.permute.xlu0 %v305
        %308 = vperm.xlu0 %307, %v303
        %v309 = vpop.permute.xlu0 %308
        %v310 = vperm.slane %v294, 2
        %v311 = vlaneseq
        %v312 = vshrl.u32 %v311, 7
        %314 = vset.pattern.permute.xlu0 %v312
        %315 = vperm.xlu0 %314, %v310
        %v316 = vpop.permute.xlu0 %315
        %318 = vst [vmem:[#allocation1] ss:$2 sm:$0xff] %v295
        %v319 = vld.sshfl [vmem:[#allocation1] sm:$0xff pattern:$0x75316420]
        %v320 = vld.sshfl [vmem:[#allocation1 + $0x8] sm:$0xff pattern:$0x75316420]
        %s321 = scalar_lea.vmem [#allocation1], 16
        %322 = vst [vmem:[%s321] ss:$2 sm:$0xff] %v295
        %v323 = vld.sshfl [vmem:[#allocation1 + $0x10] sm:$0xff pattern:$0x75316420]
        %v324 = vld.sshfl [vmem:[#allocation1 + $0x18] sm:$0xff pattern:$0x75316420]
        %s325 = scalar_lea.vmem [#allocation1], 32
        %326 = vst [vmem:[%s325] ss:$2 sm:$0xff] %v295
        %v327 = vld.sshfl [vmem:[#allocation1 + $0x20] sm:$0xff pattern:$0x75316420]
        %v328 = vld.sshfl [vmem:[#allocation1 + $0x28] sm:$0xff pattern:$0x75316420]
        %v335 = vmul.f32 %v302, %v319
        %v336 = vmul.f32 %v302, %v320
        %v337 = vmul.f32 %v309, %v323
        %v338 = vmul.f32 %v309, %v324
        %v339 = vmul.f32 %v316, %v327
        %v340 = vmul.f32 %v316, %v328
        %v347 = vrot.slane %v336, 4
        %v348 = vrot.slane %v338, 4
        %v349 = vrot.slane %v340, 4
        %vm350 = vcmask 1043456
        %v351 = vsel %vm350, %v335, %v347
        %v352 = vsel %vm350, %v337, %v348
        %v353 = vsel %vm350, %v339, %v349
        %357 = vst [vmem:[%s263] sm:$0xff] %v351
        %358 = vst [vmem:[%s263 + $0x8] sm:$0xff] %v352
        %359 = vst [vmem:[%s263 + $0x10] sm:$0xff] %v353
        %s360 = sand.u32 %s137, 1
        %s361 = scalar_lea.sflag [#allocation4], %s360
        %s362 = sand.u32 %s137, 1
        %s363 = smul.addr %s362, 24
        %s364 = scalar_lea.vmem [#allocation5], %s363
        // Predicated region
        $region37: #{tpu_custom_call.1} parent=31 // pred_check
          %p365 = pneg %p147
        $region38: #{tpu_custom_call.1} parent=31 // pred_check_branch
          %367 = sbr.rel (%p365) target = $region40
        $region39: #{tpu_custom_call.1} parent=31 // pred_region
          %s368 = smul.u32 3, %s27
          %370 = vsyncadd %s361, 0
          %s371 = smul.addr %s26, 2
          %s372 = smul.addr %s368, 2
          %s373 = sadd.s32 %s371, %s372
          %s374 = smul.addr %s25, 6
          %s375 = sadd.s32 %s373, %s374
          %s376 = smul.addr %s375, 4
          %s377 = scalar_lea.hbm %s3, %s376
          %s378 = sshll.u32 %s364, 4
          %s379 = int_to_ptr.vmem [resolvable:$true] %s378
          %s380 = sshll.u32 %s377, 4
          %s381 = int_to_ptr.hbm [resolvable:$true] %s380
          %386 = dma.vmem_to_hbm [thread:$0]  %s379, 384, %s381, %s361, 128, 128, 8
        $region40: #{tpu_custom_call.1} parent=31 // pred_fallthru
          _
      $region32: #{tpu_custom_call.1} parent=5 // pred_fallthru
        _
      %p387 = scmp.le.s32.totalorder 2, %s15
      // Predicated region
      $region41: #{tpu_custom_call.1} parent=5 // pred_check
        %p388 = pneg %p387
      $region42: #{tpu_custom_call.1} parent=5 // pred_check_branch
        %390 = sbr.rel (%p388) target = $region44
      $region43: #{tpu_custom_call.1} parent=5 // pred_region
        %s391 = ssub.s32 %s15, 2
        // Predicated region
        $region45: #{tpu_custom_call.1} parent=43 // pred_check
          %p392 = pneg %p153
        $region46: #{tpu_custom_call.1} parent=43 // pred_check_branch
          %394 = sbr.rel (%p392) target = $region48
        $region47: #{tpu_custom_call.1} parent=43 // pred_region
          %s395 = sand.u32 %s138, 1
          %s396 = scalar_lea.sflag [#allocation4], %s395
          %s397 = sand.u32 %s138, 1
          %s398 = smul.addr %s397, 24
          %s399 = scalar_lea.vmem [#allocation5], %s398
          %401 = dma.done %s396, 384
        $region48: #{tpu_custom_call.1} parent=43 // pred_fallthru
          _
      $region44: #{tpu_custom_call.1} parent=5 // pred_fallthru
        _
    $region6: #{tpu_custom_call.1} parent=1 // loop_footer
      %s19 = sadd.s32 1, %s15
    $region7: #{tpu_custom_call.1} parent=1 // loop_footer_branch
      %14 = sbr.rel target = $region3
    $region8: #{tpu_custom_call.1} parent=1 // loop_exit
      _
    %402 = vsyncpa [#allocation3], 1
    %s403 = scalar_lea.sflag [#allocation3], 1
    %404 = vsyncpa %s403, 1
    %405 = vsyncpa [#allocation4], 1
    %s406 = scalar_lea.sflag [#allocation4], 1
    %407 = vsyncpa %s406, 1

</llo_original>
